<compile_context>
chip_gen: v7x
topology: tpu7x:2x2x1
jax: 0.10.0
libtpu: 0.0.40
codegen_flags: <defaults>
</compile_context>

<pallas_src>
import jax
import jax.numpy as jnp
from jax import lax
from jax.experimental import pallas as pl
from jax.experimental.pallas import tpu as pltpu

# Conv1d layer specs: PyTorch weight shapes (Cout, Cin, K), bias=False everywhere.
_CONV_SHAPES = [(14, 16, 14), (62, 14, 24), (41, 62, 5),
                (24, 41, 9), (14, 24, 1), (10, 14, 1)]

_IN_FEATS = 16 * 49    # 784  flattened (C=16, L=49) input
_MID_FEATS = 41 * 9    # 369  flattened (C=41, L=9) pre-tanh activation
_NUM_CLASSES = 10


def _round_up(x, m):
    return ((x + m - 1) // m) * m


def _conv_chain(h, ws):
    """Apply a list of torch-layout (Cout, Cin, K) valid conv1d's, NCH layout."""
    for w in ws:
        h = lax.conv_general_dilated(
            h, w, window_strides=(1,), padding="VALID",
            dimension_numbers=("NCH", "OIH", "NCH"))
    return h


def _fold_weights(weights):
    """Fold the bias-free conv stack into two dense matrices (host-side, f32).

    W_A: (784, 369) with  flatten(conv2(conv1(conv0(x)))) == flatten(x) @ W_A
    W_B: (369, 10)  with  flatten(conv5(conv4(conv3(h)))) == flatten(h) @ W_B
    Built by pushing identity bases through the original convs, so the index
    mapping matches PyTorch's row-major (C, L) flattening exactly.
    """
    ws = [jnp.asarray(w, jnp.float32) for w in weights]

    eye_a = jnp.eye(_IN_FEATS, dtype=jnp.float32).reshape(_IN_FEATS, 16, 49)
    w_a = _conv_chain(eye_a, ws[:3]).reshape(_IN_FEATS, _MID_FEATS)      # (784, 369)

    eye_b = jnp.eye(_MID_FEATS, dtype=jnp.float32).reshape(_MID_FEATS, 41, 9)
    w_b = _conv_chain(eye_b, ws[3:]).reshape(_MID_FEATS, _NUM_CLASSES)   # (369, 10)
    return w_a, w_b


def _forward_kernel(x_ref, wa_ref, wb_ref, o_ref):
    x = x_ref[...]                                                # (Bt, 784)
    # conv0..conv2 folded -> one MXU matmul, then the single tanh (EUP).
    h = jnp.tanh(jnp.dot(x, wa_ref[...],
                         preferred_element_type=jnp.float32))     # (Bt, 369)
    # conv3..conv5 folded -> one MXU matmul.
    logits = jnp.dot(h, wb_ref[...],
                     preferred_element_type=jnp.float32)          # (Bt, 10)
    # LogSoftmax over classes, batched; one bulk store for the whole tile.
    m = jnp.max(logits, axis=-1, keepdims=True)
    lse = m + jnp.log(jnp.sum(jnp.exp(logits - m), axis=-1, keepdims=True))
    o_ref[...] = logits - lse


def conv1dtanh_21_forward(x, weights, *, b_tile=256):
    """x: (B, 1, 28, 28) or (B, 16, 49) float32 (PyTorch layout).

    weights: list of 6 arrays with torch Conv1d shapes (Cout, Cin, K).
    Returns (B, 10) log-probabilities.
    """
    B = x.shape[0]
    x2d = jnp.asarray(x, jnp.float32).reshape(B, _IN_FEATS)       # (B, 784)
    w_a, w_b = _fold_weights(weights)

    # Tile the batch; cap so the grid has >= 2 steps when B allows it (lets
    # the "parallel" axis shard across v7x's two TensorCores), and keep the
    # sublane dim a multiple of 8.
    bt = min(b_tile, _round_up(pl.cdiv(B, 2), 8), _round_up(B, 8))
    bt = max(bt, 8)
    n_tiles = pl.cdiv(B, bt)
    b_pad = n_tiles * bt
    if b_pad != B:
        x2d = jnp.pad(x2d, ((0, b_pad - B), (0, 0)))

    cost = pl.CostEstimate(
        flops=2 * (_IN_FEATS * _MID_FEATS + _MID_FEATS * _NUM_CLASSES) * b_pad,
        transcendentals=(_MID_FEATS + 2 * _NUM_CLASSES) * b_pad,
        bytes_accessed=4 * (b_pad * (_IN_FEATS + _NUM_CLASSES)
                            + w_a.size + w_b.size),
    )

    out = pl.pallas_call(
        _forward_kernel,
        out_shape=jax.ShapeDtypeStruct((b_pad, _NUM_CLASSES), jnp.float32),
        grid_spec=pltpu.PrefetchScalarGridSpec(
            num_scalar_prefetch=0,
            grid=(n_tiles,),
            in_specs=[
                pl.BlockSpec((bt, _IN_FEATS), lambda i: (i, 0)),
                # Folded weights: constant index maps -> VMEM-resident.
                pl.BlockSpec((_IN_FEATS, _MID_FEATS), lambda i: (0, 0)),
                pl.BlockSpec((_MID_FEATS, _NUM_CLASSES), lambda i: (0, 0)),
            ],
            out_specs=pl.BlockSpec((bt, _NUM_CLASSES), lambda i: (i, 0)),
        ),
        compiler_params=pltpu.CompilerParams(
            dimension_semantics=("parallel",),
        ),
        cost_estimate=cost,
    )(x2d, w_a, w_b)
    return out[:B]


def _ref_forward(x, weights):
    """Pure-JAX reference matching the PyTorch module."""
    B = x.shape[0]
    h = jnp.asarray(x, jnp.float32).reshape(B, 16, 49)
    for i, w in enumerate(weights):
        h = lax.conv_general_dilated(
            h, jnp.asarray(w, jnp.float32), window_strides=(1,),
            padding="VALID", dimension_numbers=("NCH", "OIH", "NCH"))
        if i == 2:  # tanh (f3) after the third conv (f2)
            h = jnp.tanh(h)
    logits = h.reshape(B, 10)
    return jax.nn.log_softmax(logits, axis=1)


if __name__ == "__main__":
    key = jax.random.PRNGKey(0)
    keys = jax.random.split(key, len(_CONV_SHAPES) + 1)
    weights = []
    for k, s in zip(keys[:-1], _CONV_SHAPES):
        fan_in = s[1] * s[2]
        bound = 1.0 / (fan_in ** 0.5)   # PyTorch default kaiming-uniform bound
        weights.append(jax.random.uniform(k, s, jnp.float32, -bound, bound))

    x = jax.random.normal(keys[-1], (2, 1, 28, 28), jnp.float32)

    out = jax.block_until_ready(conv1dtanh_21_forward(x, weights))
    assert out.shape == (2, 10)

    ref = _ref_forward(x, weights)
    if not bool(jnp.allclose(out, ref, atol=1e-3, rtol=1e-3)):
        raise AssertionError("Pallas kernel does not match JAX reference")

    print("KERNEL_OK")
</pallas_src>

<mosaic_0001>
module attributes {stable_mosaic.version = 11 : i64} {
  func.func @_forward_kernel(%arg0: i32, %arg1: memref<8x784xf32, #tpu.memory_space<vmem>>, %arg2: memref<784x369xf32, #tpu.memory_space<vmem>>, %arg3: memref<369x10xf32, #tpu.memory_space<vmem>>, %arg4: memref<8x10xf32, #tpu.memory_space<vmem>>) attributes {dimension_semantics = [#tpu.dimension_semantics<parallel>], iteration_bounds = array<i64: 1>, scalar_prefetch = 0 : i64, scratch_operands = 0 : i64, tpu.core_type = #tpu.core_type<tc>, window_params = [{transform_indices = @transform_0, window_bounds = array<i64: 8, 784>}, {pipeline_mode = #tpu.pipeline_mode<synchronous>, transform_indices = @transform_1, window_bounds = array<i64: 784, 369>}, {pipeline_mode = #tpu.pipeline_mode<synchronous>, transform_indices = @transform_2, window_bounds = array<i64: 369, 10>}, {transform_indices = @transform_3, window_bounds = array<i64: 8, 10>}]} {
    %c0 = arith.constant 0 : index
    %c0_0 = arith.constant 0 : index
    %0 = vector.load %arg1[%c0, %c0_0] : memref<8x784xf32, #tpu.memory_space<vmem>>, vector<8x784xf32>
    %c0_1 = arith.constant 0 : index
    %c0_2 = arith.constant 0 : index
    %1 = vector.load %arg2[%c0_1, %c0_2] : memref<784x369xf32, #tpu.memory_space<vmem>>, vector<784x369xf32>
    %cst = arith.constant dense<0.000000e+00> : vector<8x369xf32>
    %2 = tpu.matmul %0, %1, %cst {dimension_numbers = #tpu.dot_dimension_numbers<[1], [0], [0], [1], [0, 0, 1, 1], [], []>} : vector<8x784xf32>, vector<784x369xf32>, vector<8x369xf32> -> vector<8x369xf32>
    %3 = math.tanh %2 : vector<8x369xf32>
    %c0_3 = arith.constant 0 : index
    %c0_4 = arith.constant 0 : index
    %4 = vector.load %arg3[%c0_3, %c0_4] : memref<369x10xf32, #tpu.memory_space<vmem>>, vector<369x10xf32>
    %cst_5 = arith.constant dense<0.000000e+00> : vector<8x10xf32>
    %5 = tpu.matmul %3, %4, %cst_5 {dimension_numbers = #tpu.dot_dimension_numbers<[1], [0], [0], [1], [0, 0, 1, 1], [], []>} : vector<8x369xf32>, vector<369x10xf32>, vector<8x10xf32> -> vector<8x10xf32>
    %cst_6 = arith.constant dense<0xFF800000> : vector<8xf32>
    %6 = vector.multi_reduction <maximumf>, %5, %cst_6 [1] : vector<8x10xf32> to vector<8xf32>
    %7 = vector.shape_cast %6 : vector<8xf32> to vector<8x1xf32>
    %8 = vector.broadcast %7 : vector<8x1xf32> to vector<8x10xf32>
    %9 = arith.subf %5, %8 : vector<8x10xf32>
    %10 = math.exp %9 : vector<8x10xf32>
    %cst_7 = arith.constant dense<0.000000e+00> : vector<8xf32>
    %11 = vector.multi_reduction <add>, %10, %cst_7 [1] : vector<8x10xf32> to vector<8xf32>
    %12 = vector.shape_cast %11 : vector<8xf32> to vector<8x1xf32>
    %13 = math.log %12 : vector<8x1xf32>
    %14 = arith.addf %7, %13 : vector<8x1xf32>
    %15 = vector.broadcast %14 : vector<8x1xf32> to vector<8x10xf32>
    %16 = arith.subf %5, %15 : vector<8x10xf32>
    %c0_8 = arith.constant 0 : index
    %c0_9 = arith.constant 0 : index
    %17 = vector.load %arg4[%c0_8, %c0_9] : memref<8x10xf32, #tpu.memory_space<vmem>>, vector<8x10xf32>
    tpu.vector_store %arg4[%c0_8, %c0_9], %16 {strides = array<i32>} : memref<8x10xf32, #tpu.memory_space<vmem>>, vector<8x10xf32>,
    return
  }
  func.func @transform_0(%arg0: i32) -> (i32, i32) {
    %c0_i32 = arith.constant 0 : i32
    %c0_i32_0 = arith.constant 0 : i32
    return %arg0, %c0_i32 : i32, i32
  }
  func.func @transform_1(%arg0: i32) -> (i32, i32) {
    %c0_i32 = arith.constant 0 : i32
    %c0_i32_0 = arith.constant 0 : i32
    %c0_i32_1 = arith.constant 0 : i32
    return %c0_i32, %c0_i32_0 : i32, i32
  }
  func.func @transform_2(%arg0: i32) -> (i32, i32) {
    %c0_i32 = arith.constant 0 : i32
    %c0_i32_0 = arith.constant 0 : i32
    %c0_i32_1 = arith.constant 0 : i32
    return %c0_i32, %c0_i32_0 : i32, i32
  }
  func.func @transform_3(%arg0: i32) -> (i32, i32) {
    %c0_i32 = arith.constant 0 : i32
    %c0_i32_0 = arith.constant 0 : i32
    return %arg0, %c0_i32 : i32, i32
  }
}

</mosaic_0001>

<llo_original>
// kernel: tpu_custom_call.1
$region0: #{tpu_custom_call.1}
  #allocation0 [shape = 'u32[]', space=smem, size = 0x4, offset = 0x4, fixed_abs, tag = 'smem constant byte address 0x4 - core index']
  #allocation1 [shape = 'u32[144,128]{1,0:T(1,128)}', space=vmem, size = 0x12000, scoped, tag = 'internal scratch']
  %s0 = inlined_call_operand.hbm [shape: f32[8,784], index: 0, kind: input, shape index: {}]
  %s1 = inlined_call_operand.hbm [shape: f32[784,369], index: 1, kind: input, shape index: {}]
  %s2 = inlined_call_operand.vmem [shape: f32[369,10], index: 2, kind: input, shape index: {}]
  %s3 = inlined_call_operand.hbm [shape: f32[8,10], index: 3, kind: output, shape index: {}]
  %s4 = sld [smem:[#allocation0]]
  $region30: #{tpu_custom_call.1} parent=0
    _
  %s6 = ssub.s32 1, %s4
  %s7 = scalar_select 0, %s6, %s4
  $region1: #{tpu_custom_call.1} parent=0
    #allocation2 [shape = 'u8[28672]{0}', space=vmem, size = 0x7000, scoped, tag = 'input window, operand 0, single buffered']
    #allocation3 [shape = 's32[1]{0}', space=sflag, size = 0x4, scoped, tag = 'scoped memory for tpu_custom_call.1']
    #allocation4 [shape = 's32[1]{0}', space=sflag, size = 0x4, scoped, tag = 'scoped memory for tpu_custom_call.1']
    #allocation5 [shape = 'u8[1204224]{0}', space=vmem, size = 0x126000, scoped, tag = 'input window, operand 1, single buffered']
    #allocation6 [shape = 's32[1]{0}', space=sflag, size = 0x4, scoped, tag = 'scoped memory for tpu_custom_call.1']
    #allocation7 [shape = 'u8[4096]{0}', space=vmem, size = 0x1000, scoped, tag = 'output window, operand 0, single buffered']
    %8 = vsyncpa [#allocation3], 0
    %9 = vsyncpa [#allocation6], 0
    %10 = vsyncpa [#allocation4], 0
    // Predicated region
    $region2: #{tpu_custom_call.1} parent=1 // pred_check
      _
    $region3: #{tpu_custom_call.1} parent=1 // pred_check_branch
      %12 = sbr.rel (0) target = $region5
    $region4: #{tpu_custom_call.1} parent=1 // pred_region
      %s14 = ssub.s32 896, 896
      %15 = vsyncadd [#allocation3], %s14
      %s17 = sshll.u32 [#allocation2], 4
      %s18 = int_to_ptr.vmem [resolvable:$true] %s17
      %20 = dma.hbm_to_vmem [thread:$0]  %s0, 896, %s18, [#allocation3]
    $region5: #{tpu_custom_call.1} parent=1 // pred_fallthru
      _
    // Predicated region
    $region6: #{tpu_custom_call.1} parent=1 // pred_check
      _
    $region7: #{tpu_custom_call.1} parent=1 // pred_check_branch
      %22 = sbr.rel (0) target = $region9
    $region8: #{tpu_custom_call.1} parent=1 // pred_region
      %s24 = ssub.s32 37632, 37632
      %25 = vsyncadd [#allocation6], %s24
      %s26 = sshll.u32 [#allocation5], 4
      %s27 = int_to_ptr.vmem [resolvable:$true] %s26
      %32 = dma.hbm_to_vmem [thread:$0]  %s1, 37632, %s27, [#allocation6], 384, 384, 24
    $region9: #{tpu_custom_call.1} parent=1 // pred_fallthru
      _
    // Predicated region
    $region10: #{tpu_custom_call.1} parent=1 // pred_check
      _
    $region11: #{tpu_custom_call.1} parent=1 // pred_check_branch
      %34 = sbr.rel (0) target = $region13
    $region12: #{tpu_custom_call.1} parent=1 // pred_region
      _
    $region13: #{tpu_custom_call.1} parent=1 // pred_fallthru
      _
    // Predicated region
    $region14: #{tpu_custom_call.1} parent=1 // pred_check
      _
    $region15: #{tpu_custom_call.1} parent=1 // pred_check_branch
      %36 = sbr.rel (0) target = $region17
    $region16: #{tpu_custom_call.1} parent=1 // pred_region
      %37 = dma.done [#allocation3], 896
    $region17: #{tpu_custom_call.1} parent=1 // pred_fallthru
      _
    // Predicated region
    $region18: #{tpu_custom_call.1} parent=1 // pred_check
      _
    $region19: #{tpu_custom_call.1} parent=1 // pred_check_branch
      %39 = sbr.rel (0) target = $region21
    $region20: #{tpu_custom_call.1} parent=1 // pred_region
      %40 = dma.done [#allocation6], 37632
    $region21: #{tpu_custom_call.1} parent=1 // pred_fallthru
      _
    %v41 = vld [vmem:[#allocation2] sm:$0xff]
    %v42 = vld [vmem:[#allocation2 + $0x8] sm:$0xff]
    %v43 = vld [vmem:[#allocation2 + $0x10] sm:$0xff]
    %v44 = vld [vmem:[#allocation2 + $0x18] sm:$0xff]
    %v45 = vld [vmem:[#allocation2 + $0x20] sm:$0xff]
    %v46 = vld [vmem:[#allocation2 + $0x28] sm:$0xff]
    %v47 = vld [vmem:[#allocation2 + $0x30] sm:$0xff]
    %v48 = vld [vmem:[#allocation5] sm:$0xff]
    %v49 = vld [vmem:[#allocation5 + $0x8] sm:$0xff]
    %v50 = vld [vmem:[#allocation5 + $0x10] sm:$0xff]
    %v51 = vld [vmem:[#allocation5 + $0x18] sm:$0xff]
    %v52 = vld [vmem:[#allocation5 + $0x20] sm:$0xff]
    %v53 = vld [vmem:[#allocation5 + $0x28] sm:$0xff]
    %v54 = vld [vmem:[#allocation5 + $0x30] sm:$0xff]
    %v55 = vld [vmem:[#allocation5 + $0x38] sm:$0xff]
    %v56 = vld [vmem:[#allocation5 + $0x40] sm:$0xff]
    %v57 = vld [vmem:[#allocation5 + $0x48] sm:$0xff]
    %v58 = vld [vmem:[#allocation5 + $0x50] sm:$0xff]
    %v59 = vld [vmem:[#allocation5 + $0x58] sm:$0xff]
    %v60 = vld [vmem:[#allocation5 + $0x60] sm:$0xff]
    %v61 = vld [vmem:[#allocation5 + $0x68] sm:$0xff]
    %v62 = vld [vmem:[#allocation5 + $0x70] sm:$0xff]
    %v63 = vld [vmem:[#allocation5 + $0x78] sm:$0xff]
    %v64 = vld [vmem:[#allocation5 + $0x80] sm:$0xff]
    %v65 = vld [vmem:[#allocation5 + $0x88] sm:$0xff]
    %v66 = vld [vmem:[#allocation5 + $0x90] sm:$0xff]
    %v67 = vld [vmem:[#allocation5 + $0x98] sm:$0xff]
    %v68 = vld [vmem:[#allocation5 + $0xa0] sm:$0xff]
    %v69 = vld [vmem:[#allocation5 + $0xa8] sm:$0xff]
    %v70 = vld [vmem:[#allocation5 + $0xb0] sm:$0xff]
    %v71 = vld [vmem:[#allocation5 + $0xb8] sm:$0xff]
    %v72 = vld [vmem:[#allocation5 + $0xc0] sm:$0xff]
    %v73 = vld [vmem:[#allocation5 + $0xc8] sm:$0xff]
    %v74 = vld [vmem:[#allocation5 + $0xd0] sm:$0xff]
    %v75 = vld [vmem:[#allocation5 + $0xd8] sm:$0xff]
    %v76 = vld [vmem:[#allocation5 + $0xe0] sm:$0xff]
    %v77 = vld [vmem:[#allocation5 + $0xe8] sm:$0xff]
    %v78 = vld [vmem:[#allocation5 + $0xf0] sm:$0xff]
    %v79 = vld [vmem:[#allocation5 + $0xf8] sm:$0xff]
    %v80 = vld [vmem:[#allocation5 + $0x100] sm:$0xff]
    %v81 = vld [vmem:[#allocation5 + $0x108] sm:$0xff]
    %v82 = vld [vmem:[#allocation5 + $0x110] sm:$0xff]
    %v83 = vld [vmem:[#allocation5 + $0x118] sm:$0xff]
    %v84 = vld [vmem:[#allocation5 + $0x120] sm:$0xff]
    %v85 = vld [vmem:[#allocation5 + $0x128] sm:$0xff]
    %v86 = vld [vmem:[#allocation5 + $0x130] sm:$0xff]
    %v87 = vld [vmem:[#allocation5 + $0x138] sm:$0xff]
    %v88 = vld [vmem:[#allocation5 + $0x140] sm:$0xff]
    %v89 = vld [vmem:[#allocation5 + $0x148] sm:$0xff]
    %v90 = vld [vmem:[#allocation5 + $0x150] sm:$0xff]
    %v91 = vld [vmem:[#allocation5 + $0x158] sm:$0xff]
    %v92 = vld [vmem:[#allocation5 + $0x160] sm:$0xff]
    %v93 = vld [vmem:[#allocation5 + $0x168] sm:$0xff]
    %v94 = vld [vmem:[#allocation5 + $0x170] sm:$0xff]
    %v95 = vld [vmem:[#allocation5 + $0x178] sm:$0xff]
    %v96 = vld [vmem:[#allocation5 + $0x180] sm:$0xff]
    %v97 = vld [vmem:[#allocation5 + $0x188] sm:$0xff]
    %v98 = vld [vmem:[#allocation5 + $0x190] sm:$0xff]
    %v99 = vld [vmem:[#allocation5 + $0x198] sm:$0xff]
    %v100 = vld [vmem:[#allocation5 + $0x1a0] sm:$0xff]
    %v101 = vld [vmem:[#allocation5 + $0x1a8] sm:$0xff]
    %v102 = vld [vmem:[#allocation5 + $0x1b0] sm:$0xff]
    %v103 = vld [vmem:[#allocation5 + $0x1b8] sm:$0xff]
    %v104 = vld [vmem:[#allocation5 + $0x1c0] sm:$0xff]
    %v105 = vld [vmem:[#allocation5 + $0x1c8] sm:$0xff]
    %v106 = vld [vmem:[#allocation5 + $0x1d0] sm:$0xff]
    %v107 = vld [vmem:[#allocation5 + $0x1d8] sm:$0xff]
    %v108 = vld [vmem:[#allocation5 + $0x1e0] sm:$0xff]
    %v109 = vld [vmem:[#allocation5 + $0x1e8] sm:$0xff]
    %v110 = vld [vmem:[#allocation5 + $0x1f0] sm:$0xff]
    %v111 = vld [vmem:[#allocation5 + $0x1f8] sm:$0xff]
    %v112 = vld [vmem:[#allocation5 + $0x200] sm:$0xff]
    %v113 = vld [vmem:[#allocation5 + $0x208] sm:$0xff]
    %v114 = vld [vmem:[#allocation5 + $0x210] sm:$0xff]
    %v115 = vld [vmem:[#allocation5 + $0x218] sm:$0xff]
    %v116 = vld [vmem:[#allocation5 + $0x220] sm:$0xff]
    %v117 = vld [vmem:[#allocation5 + $0x228] sm:$0xff]
    %v118 = vld [vmem:[#allocation5 + $0x230] sm:$0xff]
    %v119 = vld [vmem:[#allocation5 + $0x238] sm:$0xff]
    %v120 = vld [vmem:[#allocation5 + $0x240] sm:$0xff]
    %v121 = vld [vmem:[#allocation5 + $0x248] sm:$0xff]
    %v122 = vld [vmem:[#allocation5 + $0x250] sm:$0xff]
    %v123 = vld [vmem:[#allocation5 + $0x258] sm:$0xff]
    %v124 = vld [vmem:[#allocation5 + $0x260] sm:$0xff]
    %v125 = vld [vmem:[#allocation5 + $0x268] sm:$0xff]
    %v126 = vld [vmem:[#allocation5 + $0x270] sm:$0xff]
    %v127 = vld [vmem:[#allocation5 + $0x278] sm:$0xff]
    %v128 = vld [vmem:[#allocation5 + $0x280] sm:$0xff]
    %v129 = vld [vmem:[#allocation5 + $0x288] sm:$0xff]
    %v130 = vld [vmem:[#allocation5 + $0x290] sm:$0xff]
    %v131 = vld [vmem:[#allocation5 + $0x298] sm:$0xff]
    %v132 = vld [vmem:[#allocation5 + $0x2a0] sm:$0xff]
    %v133 = vld [vmem:[#allocation5 + $0x2a8] sm:$0xff]
    %v134 = vld [vmem:[#allocation5 + $0x2b0] sm:$0xff]
    %v135 = vld [vmem:[#allocation5 + $0x2b8] sm:$0xff]
    %v136 = vld [vmem:[#allocation5 + $0x2c0] sm:$0xff]
    %v137 = vld [vmem:[#allocation5 + $0x2c8] sm:$0xff]
    %v138 = vld [vmem:[#allocation5 + $0x2d0] sm:$0xff]
    %v139 = vld [vmem:[#allocation5 + $0x2d8] sm:$0xff]
    %v140 = vld [vmem:[#allocation5 + $0x2e0] sm:$0xff]
    %v141 = vld [vmem:[#allocation5 + $0x2e8] sm:$0xff]
    %v142 = vld [vmem:[#allocation5 + $0x2f0] sm:$0xff]
    %v143 = vld [vmem:[#allocation5 + $0x2f8] sm:$0xff]
    %v144 = vld [vmem:[#allocation5 + $0x300] sm:$0xff]
    %v145 = vld [vmem:[#allocation5 + $0x308] sm:$0xff]
    %v146 = vld [vmem:[#allocation5 + $0x310] sm:$0xff]
    %v147 = vld [vmem:[#allocation5 + $0x318] sm:$0xff]
    %v148 = vld [vmem:[#allocation5 + $0x320] sm:$0xff]
    %v149 = vld [vmem:[#allocation5 + $0x328] sm:$0xff]
    %v150 = vld [vmem:[#allocation5 + $0x330] sm:$0xff]
    %v151 = vld [vmem:[#allocation5 + $0x338] sm:$0xff]
    %v152 = vld [vmem:[#allocation5 + $0x340] sm:$0xff]
    %v153 = vld [vmem:[#allocation5 + $0x348] sm:$0xff]
    %v154 = vld [vmem:[#allocation5 + $0x350] sm:$0xff]
    %v155 = vld [vmem:[#allocation5 + $0x358] sm:$0xff]
    %v156 = vld [vmem:[#allocation5 + $0x360] sm:$0xff]
    %v157 = vld [vmem:[#allocation5 + $0x368] sm:$0xff]
    %v158 = vld [vmem:[#allocation5 + $0x370] sm:$0xff]
    %v159 = vld [vmem:[#allocation5 + $0x378] sm:$0xff]
    %v160 = vld [vmem:[#allocation5 + $0x380] sm:$0xff]
    %v161 = vld [vmem:[#allocation5 + $0x388] sm:$0xff]
    %v162 = vld [vmem:[#allocation5 + $0x390] sm:$0xff]
    %v163 = vld [vmem:[#allocation5 + $0x398] sm:$0xff]
    %v164 = vld [vmem:[#allocation5 + $0x3a0] sm:$0xff]
    %v165 = vld [vmem:[#allocation5 + $0x3a8] sm:$0xff]
    %v166 = vld [vmem:[#allocation5 + $0x3b0] sm:$0xff]
    %v167 = vld [vmem:[#allocation5 + $0x3b8] sm:$0xff]
    %v168 = vld [vmem:[#allocation5 + $0x3c0] sm:$0xff]
    %v169 = vld [vmem:[#allocation5 + $0x3c8] sm:$0xff]
    %v170 = vld [vmem:[#allocation5 + $0x3d0] sm:$0xff]
    %v171 = vld [vmem:[#allocation5 + $0x3d8] sm:$0xff]
    %v172 = vld [vmem:[#allocation5 + $0x3e0] sm:$0xff]
    %v173 = vld [vmem:[#allocation5 + $0x3e8] sm:$0xff]
    %v174 = vld [vmem:[#allocation5 + $0x3f0] sm:$0xff]
    %v175 = vld [vmem:[#allocation5 + $0x3f8] sm:$0xff]
    %v176 = vld [vmem:[#allocation5 + $0x400] sm:$0xff]
    %v177 = vld [vmem:[#allocation5 + $0x408] sm:$0xff]
    %v178 = vld [vmem:[#allocation5 + $0x410] sm:$0xff]
    %v179 = vld [vmem:[#allocation5 + $0x418] sm:$0xff]
    %v180 = vld [vmem:[#allocation5 + $0x420] sm:$0xff]
    %v181 = vld [vmem:[#allocation5 + $0x428] sm:$0xff]
    %v182 = vld [vmem:[#allocation5 + $0x430] sm:$0xff]
    %v183 = vld [vmem:[#allocation5 + $0x438] sm:$0xff]
    %v184 = vld [vmem:[#allocation5 + $0x440] sm:$0xff]
    %v185 = vld [vmem:[#allocation5 + $0x448] sm:$0xff]
    %v186 = vld [vmem:[#allocation5 + $0x450] sm:$0xff]
    %v187 = vld [vmem:[#allocation5 + $0x458] sm:$0xff]
    %v188 = vld [vmem:[#allocation5 + $0x460] sm:$0xff]
    %v189 = vld [vmem:[#allocation5 + $0x468] sm:$0xff]
    %v190 = vld [vmem:[#allocation5 + $0x470] sm:$0xff]
    %v191 = vld [vmem:[#allocation5 + $0x478] sm:$0xff]
    %v192 = vld [vmem:[#allocation5 + $0x480] sm:$0xff]
    %v193 = vld [vmem:[#allocation5 + $0x488] sm:$0xff]
    %v194 = vld [vmem:[#allocation5 + $0x490] sm:$0xff]
    %v195 = vld [vmem:[#allocation5 + $0x498] sm:$0xff]
    %v196 = vld [vmem:[#allocation5 + $0x4a0] sm:$0xff]
    %v197 = vld [vmem:[#allocation5 + $0x4a8] sm:$0xff]
    %v198 = vld [vmem:[#allocation5 + $0x4b0] sm:$0xff]
    %v199 = vld [vmem:[#allocation5 + $0x4b8] sm:$0xff]
    %v200 = vld [vmem:[#allocation5 + $0x4c0] sm:$0xff]
    %v201 = vld [vmem:[#allocation5 + $0x4c8] sm:$0xff]
    %v202 = vld [vmem:[#allocation5 + $0x4d0] sm:$0xff]
    %v203 = vld [vmem:[#allocation5 + $0x4d8] sm:$0xff]
    %v204 = vld [vmem:[#allocation5 + $0x4e0] sm:$0xff]
    %v205 = vld [vmem:[#allocation5 + $0x4e8] sm:$0xff]
    %v206 = vld [vmem:[#allocation5 + $0x4f0] sm:$0xff]
    %v207 = vld [vmem:[#allocation5 + $0x4f8] sm:$0xff]
    %v208 = vld [vmem:[#allocation5 + $0x500] sm:$0xff]
    %v209 = vld [vmem:[#allocation5 + $0x508] sm:$0xff]
    %v210 = vld [vmem:[#allocation5 + $0x510] sm:$0xff]
    %v211 = vld [vmem:[#allocation5 + $0x518] sm:$0xff]
    %v212 = vld [vmem:[#allocation5 + $0x520] sm:$0xff]
    %v213 = vld [vmem:[#allocation5 + $0x528] sm:$0xff]
    %v214 = vld [vmem:[#allocation5 + $0x530] sm:$0xff]
    %v215 = vld [vmem:[#allocation5 + $0x538] sm:$0xff]
    %v216 = vld [vmem:[#allocation5 + $0x540] sm:$0xff]
    %v217 = vld [vmem:[#allocation5 + $0x548] sm:$0xff]
    %v218 = vld [vmem:[#allocation5 + $0x550] sm:$0xff]
    %v219 = vld [vmem:[#allocation5 + $0x558] sm:$0xff]
    %v220 = vld [vmem:[#allocation5 + $0x560] sm:$0xff]
    %v221 = vld [vmem:[#allocation5 + $0x568] sm:$0xff]
    %v222 = vld [vmem:[#allocation5 + $0x570] sm:$0xff]
    %v223 = vld [vmem:[#allocation5 + $0x578] sm:$0xff]
    %v224 = vld [vmem:[#allocation5 + $0x580] sm:$0xff]
    %v225 = vld [vmem:[#allocation5 + $0x588] sm:$0xff]
    %v226 = vld [vmem:[#allocation5 + $0x590] sm:$0xff]
    %v227 = vld [vmem:[#allocation5 + $0x598] sm:$0xff]
    %v228 = vld [vmem:[#allocation5 + $0x5a0] sm:$0xff]
    %v229 = vld [vmem:[#allocation5 + $0x5a8] sm:$0xff]
    %v230 = vld [vmem:[#allocation5 + $0x5b0] sm:$0xff]
    %v231 = vld [vmem:[#allocation5 + $0x5b8] sm:$0xff]
    %v232 = vld [vmem:[#allocation5 + $0x5c0] sm:$0xff]
    %v233 = vld [vmem:[#allocation5 + $0x5c8] sm:$0xff]
    %v234 = vld [vmem:[#allocation5 + $0x5d0] sm:$0xff]
    %v235 = vld [vmem:[#allocation5 + $0x5d8] sm:$0xff]
    %v236 = vld [vmem:[#allocation5 + $0x5e0] sm:$0xff]
    %v237 = vld [vmem:[#allocation5 + $0x5e8] sm:$0xff]
    %v238 = vld [vmem:[#allocation5 + $0x5f0] sm:$0xff]
    %v239 = vld [vmem:[#allocation5 + $0x5f8] sm:$0xff]
    %v240 = vld [vmem:[#allocation5 + $0x600] sm:$0xff]
    %v241 = vld [vmem:[#allocation5 + $0x608] sm:$0xff]
    %v242 = vld [vmem:[#allocation5 + $0x610] sm:$0xff]
    %v243 = vld [vmem:[#allocation5 + $0x618] sm:$0xff]
    %v244 = vld [vmem:[#allocation5 + $0x620] sm:$0xff]
    %v245 = vld [vmem:[#allocation5 + $0x628] sm:$0xff]
    %v246 = vld [vmem:[#allocation5 + $0x630] sm:$0xff]
    %v247 = vld [vmem:[#allocation5 + $0x638] sm:$0xff]
    %v248 = vld [vmem:[#allocation5 + $0x640] sm:$0xff]
    %v249 = vld [vmem:[#allocation5 + $0x648] sm:$0xff]
    %v250 = vld [vmem:[#allocation5 + $0x650] sm:$0xff]
    %v251 = vld [vmem:[#allocation5 + $0x658] sm:$0xff]
    %v252 = vld [vmem:[#allocation5 + $0x660] sm:$0xff]
    %v253 = vld [vmem:[#allocation5 + $0x668] sm:$0xff]
    %v254 = vld [vmem:[#allocation5 + $0x670] sm:$0xff]
    %v255 = vld [vmem:[#allocation5 + $0x678] sm:$0xff]
    %v256 = vld [vmem:[#allocation5 + $0x680] sm:$0xff]
    %v257 = vld [vmem:[#allocation5 + $0x688] sm:$0xff]
    %v258 = vld [vmem:[#allocation5 + $0x690] sm:$0xff]
    %v259 = vld [vmem:[#allocation5 + $0x698] sm:$0xff]
    %v260 = vld [vmem:[#allocation5 + $0x6a0] sm:$0xff]
    %v261 = vld [vmem:[#allocation5 + $0x6a8] sm:$0xff]
    %v262 = vld [vmem:[#allocation5 + $0x6b0] sm:$0xff]
    %v263 = vld [vmem:[#allocation5 + $0x6b8] sm:$0xff]
    %v264 = vld [vmem:[#allocation5 + $0x6c0] sm:$0xff]
    %v265 = vld [vmem:[#allocation5 + $0x6c8] sm:$0xff]
    %v266 = vld [vmem:[#allocation5 + $0x6d0] sm:$0xff]
    %v267 = vld [vmem:[#allocation5 + $0x6d8] sm:$0xff]
    %v268 = vld [vmem:[#allocation5 + $0x6e0] sm:$0xff]
    %v269 = vld [vmem:[#allocation5 + $0x6e8] sm:$0xff]
    %v270 = vld [vmem:[#allocation5 + $0x6f0] sm:$0xff]
    %v271 = vld [vmem:[#allocation5 + $0x6f8] sm:$0xff]
    %v272 = vld [vmem:[#allocation5 + $0x700] sm:$0xff]
    %v273 = vld [vmem:[#allocation5 + $0x708] sm:$0xff]
    %v274 = vld [vmem:[#allocation5 + $0x710] sm:$0xff]
    %v275 = vld [vmem:[#allocation5 + $0x718] sm:$0xff]
    %v276 = vld [vmem:[#allocation5 + $0x720] sm:$0xff]
    %v277 = vld [vmem:[#allocation5 + $0x728] sm:$0xff]
    %v278 = vld [vmem:[#allocation5 + $0x730] sm:$0xff]
    %v279 = vld [vmem:[#allocation5 + $0x738] sm:$0xff]
    %v280 = vld [vmem:[#allocation5 + $0x740] sm:$0xff]
    %v281 = vld [vmem:[#allocation5 + $0x748] sm:$0xff]
    %v282 = vld [vmem:[#allocation5 + $0x750] sm:$0xff]
    %v283 = vld [vmem:[#allocation5 + $0x758] sm:$0xff]
    %v284 = vld [vmem:[#allocation5 + $0x760] sm:$0xff]
    %v285 = vld [vmem:[#allocation5 + $0x768] sm:$0xff]
    %v286 = vld [vmem:[#allocation5 + $0x770] sm:$0xff]
    %v287 = vld [vmem:[#allocation5 + $0x778] sm:$0xff]
    %v288 = vld [vmem:[#allocation5 + $0x780] sm:$0xff]
    %v289 = vld [vmem:[#allocation5 + $0x788] sm:$0xff]
    %v290 = vld [vmem:[#allocation5 + $0x790] sm:$0xff]
    %v291 = vld [vmem:[#allocation5 + $0x798] sm:$0xff]
    %v292 = vld [vmem:[#allocation5 + $0x7a0] sm:$0xff]
    %v293 = vld [vmem:[#allocation5 + $0x7a8] sm:$0xff]
    %v294 = vld [vmem:[#allocation5 + $0x7b0] sm:$0xff]
    %v295 = vld [vmem:[#allocation5 + $0x7b8] sm:$0xff]
    %v296 = vld [vmem:[#allocation5 + $0x7c0] sm:$0xff]
    %v297 = vld [vmem:[#allocation5 + $0x7c8] sm:$0xff]
    %v298 = vld [vmem:[#allocation5 + $0x7d0] sm:$0xff]
    %v299 = vld [vmem:[#allocation5 + $0x7d8] sm:$0xff]
    %v300 = vld [vmem:[#allocation5 + $0x7e0] sm:$0xff]
    %v301 = vld [vmem:[#allocation5 + $0x7e8] sm:$0xff]
    %v302 = vld [vmem:[#allocation5 + $0x7f0] sm:$0xff]
    %v303 = vld [vmem:[#allocation5 + $0x7f8] sm:$0xff]
    %v304 = vld [vmem:[#allocation5 + $0x800] sm:$0xff]
    %v305 = vld [vmem:[#allocation5 + $0x808] sm:$0xff]
    %v306 = vld [vmem:[#allocation5 + $0x810] sm:$0xff]
    %v307 = vld [vmem:[#allocation5 + $0x818] sm:$0xff]
    %v308 = vld [vmem:[#allocation5 + $0x820] sm:$0xff]
    %v309 = vld [vmem:[#allocation5 + $0x828] sm:$0xff]
    %v310 = vld [vmem:[#allocation5 + $0x830] sm:$0xff]
    %v311 = vld [vmem:[#allocation5 + $0x838] sm:$0xff]
    %v312 = vld [vmem:[#allocation5 + $0x840] sm:$0xff]
    %v313 = vld [vmem:[#allocation5 + $0x848] sm:$0xff]
    %v314 = vld [vmem:[#allocation5 + $0x850] sm:$0xff]
    %v315 = vld [vmem:[#allocation5 + $0x858] sm:$0xff]
    %v316 = vld [vmem:[#allocation5 + $0x860] sm:$0xff]
    %v317 = vld [vmem:[#allocation5 + $0x868] sm:$0xff]
    %v318 = vld [vmem:[#allocation5 + $0x870] sm:$0xff]
    %v319 = vld [vmem:[#allocation5 + $0x878] sm:$0xff]
    %v320 = vld [vmem:[#allocation5 + $0x880] sm:$0xff]
    %v321 = vld [vmem:[#allocation5 + $0x888] sm:$0xff]
    %v322 = vld [vmem:[#allocation5 + $0x890] sm:$0xff]
    %v323 = vld [vmem:[#allocation5 + $0x898] sm:$0xff]
    %v324 = vld [vmem:[#allocation5 + $0x8a0] sm:$0xff]
    %v325 = vld [vmem:[#allocation5 + $0x8a8] sm:$0xff]
    %v326 = vld [vmem:[#allocation5 + $0x8b0] sm:$0xff]
    %v327 = vld [vmem:[#allocation5 + $0x8b8] sm:$0xff]
    %v328 = vld [vmem:[#allocation5 + $0x8c0] sm:$0xff]
    %v329 = vld [vmem:[#allocation5 + $0x8c8] sm:$0xff]
    %v330 = vld [vmem:[#allocation5 + $0x8d0] sm:$0xff]
    %v331 = vld [vmem:[#allocation5 + $0x8d8] sm:$0xff]
    %v332 = vld [vmem:[#allocation5 + $0x8e0] sm:$0xff]
    %v333 = vld [vmem:[#allocation5 + $0x8e8] sm:$0xff]
    %v334 = vld [vmem:[#allocation5 + $0x8f0] sm:$0xff]
    %v335 = vld [vmem:[#allocation5 + $0x8f8] sm:$0xff]
    %v336 = vld [vmem:[#allocation5 + $0x900] sm:$0xff]
    %v337 = vld [vmem:[#allocation5 + $0x908] sm:$0xff]
    %v338 = vld [vmem:[#allocation5 + $0x910] sm:$0xff]
    %v339 = vld [vmem:[#allocation5 + $0x918] sm:$0xff]
    %v340 = vld [vmem:[#allocation5 + $0x920] sm:$0xff]
    %v341 = vld [vmem:[#allocation5 + $0x928] sm:$0xff]
    %vm342 = vcmask 130048
    %v344 = vsel %vm342, %v47, 0
    %346 = vmatprep.subr.mxu0 %v49
    %347 = vmatpush1.msra.mxu0 %v48
    %348 = vmatprep.subr.mxu0 %v52
    %349 = vmatpush1.msra.mxu0 %v51
    %350 = vmatprep.subr.mxu0 %v55
    %351 = vmatpush1.msra.mxu0 %v54
    %352 = vmatprep.subr.mxu0 %v58
    %353 = vmatpush1.msra.mxu0 %v57
    %354 = vmatprep.subr.mxu0 %v61
    %355 = vmatpush1.msra.mxu0 %v60
    %356 = vmatprep.subr.mxu0 %v64
    %357 = vmatpush1.msra.mxu0 %v63
    %358 = vmatprep.subr.mxu0 %v67
    %359 = vmatpush1.msra.mxu0 %v66
    %360 = vmatprep.subr.mxu0 %v70
    %361 = vmatpush1.msra.mxu0 %v69
    %362 = vmatprep.subr.mxu0 %v73
    %363 = vmatpush1.msra.mxu0 %v72
    %364 = vmatprep.subr.mxu0 %v76
    %365 = vmatpush1.msra.mxu0 %v75
    %366 = vmatprep.subr.mxu0 %v79
    %367 = vmatpush1.msra.mxu0 %v78
    %368 = vmatprep.subr.mxu0 %v82
    %369 = vmatpush1.msra.mxu0 %v81
    %370 = vmatprep.subr.mxu0 %v85
    %371 = vmatpush1.msra.mxu0 %v84
    %372 = vmatprep.subr.mxu0 %v88
    %373 = vmatpush1.msra.mxu0 %v87
    %374 = vmatprep.subr.mxu0 %v91
    %375 = vmatpush1.msra.mxu0 %v90
    %376 = vmatprep.subr.mxu0 %v94
    %377 = vmatpush1.msra.mxu0 %v93
    %378 = vmatprep.subr.mxu0 %v97
    %379 = vmatpush1.msra.mxu0 %v96
    %380 = vmatprep.subr.mxu0 %v100
    %381 = vmatpush1.msra.mxu0 %v99
    %382 = vmatprep.subr.mxu0 %v103
    %383 = vmatpush1.msra.mxu0 %v102
    %384 = vmatprep.subr.mxu0 %v106
    %385 = vmatpush1.msra.mxu0 %v105
    %386 = vmatprep.subr.mxu0 %v109
    %387 = vmatpush1.msra.mxu0 %v108
    %388 = vmatprep.subr.mxu0 %v112
    %389 = vmatpush1.msra.mxu0 %v111
    %390 = vmatprep.subr.mxu0 %v115
    %391 = vmatpush1.msra.mxu0 %v114
    %392 = vmatprep.subr.mxu0 %v118
    %393 = vmatpush1.msra.mxu0 %v117
    %394 = vmatprep.subr.mxu0 %v121
    %395 = vmatpush1.msra.mxu0 %v120
    %396 = vmatprep.subr.mxu0 %v124
    %397 = vmatpush1.msra.mxu0 %v123
    %398 = vmatprep.subr.mxu0 %v127
    %399 = vmatpush1.msra.mxu0 %v126
    %400 = vmatprep.subr.mxu0 %v130
    %401 = vmatpush1.msra.mxu0 %v129
    %402 = vmatprep.subr.mxu0 %v133
    %403 = vmatpush1.msra.mxu0 %v132
    %404 = vmatprep.subr.mxu0 %v136
    %405 = vmatpush1.msra.mxu0 %v135
    %406 = vmatprep.subr.mxu0 %v139
    %407 = vmatpush1.msra.mxu0 %v138
    %408 = vmatprep.subr.mxu0 %v142
    %409 = vmatpush1.msra.mxu0 %v141
    %410 = vmatprep.mubr.f32.mxu0 %v42
    %411 = vmatmul.mubr.f32.gmra.mrb[0].mxu0 %v41
    %v412 = vpop.f32.mrb[0].mxu0
    %v413 = vadd.f32 0.0, %v412
    %v414 = vpop.f32.mrb[0].mxu0
    %v415 = vadd.f32 0.0, %v414
    %416 = vdwg.mxu0
    %417 = vmatprep.subr.mxu0 %v145
    %418 = vmatpush1.msra.mxu0 %v144
    %419 = vmatprep.subr.mxu0 %v148
    %420 = vmatpush1.msra.mxu0 %v147
    %421 = vmatprep.subr.mxu0 %v151
    %422 = vmatpush1.msra.mxu0 %v150
    %423 = vmatprep.subr.mxu0 %v154
    %424 = vmatpush1.msra.mxu0 %v153
    %425 = vmatprep.subr.mxu0 %v157
    %426 = vmatpush1.msra.mxu0 %v156
    %427 = vmatprep.subr.mxu0 %v160
    %428 = vmatpush1.msra.mxu0 %v159
    %429 = vmatprep.subr.mxu0 %v163
    %430 = vmatpush1.msra.mxu0 %v162
    %431 = vmatprep.subr.mxu0 %v166
    %432 = vmatpush1.msra.mxu0 %v165
    %433 = vmatprep.subr.mxu0 %v169
    %434 = vmatpush1.msra.mxu0 %v168
    %435 = vmatprep.subr.mxu0 %v172
    %436 = vmatpush1.msra.mxu0 %v171
    %437 = vmatprep.subr.mxu0 %v175
    %438 = vmatpush1.msra.mxu0 %v174
    %439 = vmatprep.subr.mxu0 %v178
    %440 = vmatpush1.msra.mxu0 %v177
    %441 = vmatprep.subr.mxu0 %v181
    %442 = vmatpush1.msra.mxu0 %v180
    %443 = vmatprep.subr.mxu0 %v184
    %444 = vmatpush1.msra.mxu0 %v183
    %445 = vmatprep.subr.mxu0 %v187
    %446 = vmatpush1.msra.mxu0 %v186
    %447 = vmatprep.subr.mxu0 %v190
    %448 = vmatpush1.msra.mxu0 %v189
    %449 = vmatprep.subr.mxu0 %v193
    %450 = vmatpush1.msra.mxu0 %v192
    %451 = vmatprep.subr.mxu0 %v196
    %452 = vmatpush1.msra.mxu0 %v195
    %453 = vmatprep.subr.mxu0 %v199
    %454 = vmatpush1.msra.mxu0 %v198
    %455 = vmatprep.subr.mxu0 %v202
    %456 = vmatpush1.msra.mxu0 %v201
    %457 = vmatprep.subr.mxu0 %v205
    %458 = vmatpush1.msra.mxu0 %v204
    %459 = vmatprep.subr.mxu0 %v208
    %460 = vmatpush1.msra.mxu0 %v207
    %461 = vmatprep.subr.mxu0 %v211
    %462 = vmatpush1.msra.mxu0 %v210
    %463 = vmatprep.subr.mxu0 %v214
    %464 = vmatpush1.msra.mxu0 %v213
    %465 = vmatprep.subr.mxu0 %v217
    %466 = vmatpush1.msra.mxu0 %v216
    %467 = vmatprep.subr.mxu0 %v220
    %468 = vmatpush1.msra.mxu0 %v219
    %469 = vmatprep.subr.mxu0 %v223
    %470 = vmatpush1.msra.mxu0 %v222
    %471 = vmatprep.subr.mxu0 %v226
    %472 = vmatpush1.msra.mxu0 %v225
    %473 = vmatprep.subr.mxu0 %v229
    %474 = vmatpush1.msra.mxu0 %v228
    %475 = vmatprep.subr.mxu0 %v232
    %476 = vmatpush1.msra.mxu0 %v231
    %477 = vmatprep.subr.mxu0 %v235
    %478 = vmatpush1.msra.mxu0 %v234
    %479 = vmatprep.subr.mxu0 %v238
    %480 = vmatpush1.msra.mxu0 %v237
    %481 = vmatprep.mubr.f32.mxu0 %v44
    %482 = vmatmul.mubr.f32.gmra.mrb[0].mxu0 %v43
    %v483 = vpop.f32.mrb[0].mxu0
    %v484 = vadd.f32 %v413, %v483
    %v485 = vpop.f32.mrb[0].mxu0
    %v486 = vadd.f32 %v415, %v485
    %487 = vdwg.mxu0
    %488 = vmatprep.subr.mxu0 %v241
    %489 = vmatpush1.msra.mxu0 %v240
    %490 = vmatprep.subr.mxu0 %v244
    %491 = vmatpush1.msra.mxu0 %v243
    %492 = vmatprep.subr.mxu0 %v247
    %493 = vmatpush1.msra.mxu0 %v246
    %494 = vmatprep.subr.mxu0 %v250
    %495 = vmatpush1.msra.mxu0 %v249
    %496 = vmatprep.subr.mxu0 %v253
    %497 = vmatpush1.msra.mxu0 %v252
    %498 = vmatprep.subr.mxu0 %v256
    %499 = vmatpush1.msra.mxu0 %v255
    %500 = vmatprep.subr.mxu0 %v259
    %501 = vmatpush1.msra.mxu0 %v258
    %502 = vmatprep.subr.mxu0 %v262
    %503 = vmatpush1.msra.mxu0 %v261
    %504 = vmatprep.subr.mxu0 %v265
    %505 = vmatpush1.msra.mxu0 %v264
    %506 = vmatprep.subr.mxu0 %v268
    %507 = vmatpush1.msra.mxu0 %v267
    %508 = vmatprep.subr.mxu0 %v271
    %509 = vmatpush1.msra.mxu0 %v270
    %510 = vmatprep.subr.mxu0 %v274
    %511 = vmatpush1.msra.mxu0 %v273
    %512 = vmatprep.subr.mxu0 %v277
    %513 = vmatpush1.msra.mxu0 %v276
    %514 = vmatprep.subr.mxu0 %v280
    %515 = vmatpush1.msra.mxu0 %v279
    %516 = vmatprep.subr.mxu0 %v283
    %517 = vmatpush1.msra.mxu0 %v282
    %518 = vmatprep.subr.mxu0 %v286
    %519 = vmatpush1.msra.mxu0 %v285
    %520 = vmatprep.subr.mxu0 %v289
    %521 = vmatpush1.msra.mxu0 %v288
    %522 = vmatprep.subr.mxu0 %v292
    %523 = vmatpush1.msra.mxu0 %v291
    %524 = vmatprep.subr.mxu0 %v295
    %525 = vmatpush1.msra.mxu0 %v294
    %526 = vmatprep.subr.mxu0 %v298
    %527 = vmatpush1.msra.mxu0 %v297
    %528 = vmatprep.subr.mxu0 %v301
    %529 = vmatpush1.msra.mxu0 %v300
    %530 = vmatprep.subr.mxu0 %v304
    %531 = vmatpush1.msra.mxu0 %v303
    %532 = vmatprep.subr.mxu0 %v307
    %533 = vmatpush1.msra.mxu0 %v306
    %534 = vmatprep.subr.mxu0 %v310
    %535 = vmatpush1.msra.mxu0 %v309
    %536 = vmatprep.subr.mxu0 %v313
    %537 = vmatpush1.msra.mxu0 %v312
    %538 = vmatprep.subr.mxu0 %v316
    %539 = vmatpush1.msra.mxu0 %v315
    %540 = vmatprep.subr.mxu0 %v319
    %541 = vmatpush1.msra.mxu0 %v318
    %542 = vmatprep.subr.mxu0 %v322
    %543 = vmatpush1.msra.mxu0 %v321
    %544 = vmatprep.subr.mxu0 %v325
    %545 = vmatpush1.msra.mxu0 %v324
    %546 = vmatprep.subr.mxu0 %v328
    %547 = vmatpush1.msra.mxu0 %v327
    %548 = vmatprep.subr.mxu0 %v331
    %549 = vmatpush1.msra.mxu0 %v330
    %550 = vmatprep.subr.mxu0 %v334
    %551 = vmatpush1.msra.mxu0 %v333
    %552 = vmatprep.mubr.f32.mxu0 %v46
    %553 = vmatmul.mubr.f32.gmra.mrb[0].mxu0 %v45
    %v554 = vpop.f32.mrb[0].mxu0
    %v555 = vadd.f32 %v484, %v554
    %v556 = vpop.f32.mrb[0].mxu0
    %v557 = vadd.f32 %v486, %v556
    %558 = vdwg.mxu0
    %559 = vmatprep.subr.mxu0 %v337
    %560 = vmatpush1.msra.mxu0 %v336
    %561 = vmatprep.subr.mxu0 %v340
    %562 = vmatpush1.msra.mxu0 %v339
    %563 = vmatprep.subr.mxu0 0.0
    %564 = vmatpush1.msra.mxu0 0.0
    %565 = vmatprep.subr.mxu0 0.0
    %566 = vmatpush1.msra.mxu0 0.0
    %567 = vmatprep.subr.mxu0 0.0
    %568 = vmatpush1.msra.mxu0 0.0
    %569 = vmatprep.subr.mxu0 0.0
    %570 = vmatpush1.msra.mxu0 0.0
    %571 = vmatprep.subr.mxu0 0.0
    %572 = vmatpush1.msra.mxu0 0.0
    %573 = vmatprep.subr.mxu0 0.0
    %574 = vmatpush1.msra.mxu0 0.0
    %575 = vmatprep.subr.mxu0 0.0
    %576 = vmatpush1.msra.mxu0 0.0
    %577 = vmatprep.subr.mxu0 0.0
    %578 = vmatpush1.msra.mxu0 0.0
    %579 = vmatprep.subr.mxu0 0.0
    %580 = vmatpush1.msra.mxu0 0.0
    %581 = vmatprep.subr.mxu0 0.0
    %582 = vmatpush1.msra.mxu0 0.0
    %583 = vmatprep.subr.mxu0 0.0
    %584 = vmatpush1.msra.mxu0 0.0
    %585 = vmatprep.subr.mxu0 0.0
    %586 = vmatpush1.msra.mxu0 0.0
    %587 = vmatprep.subr.mxu0 0.0
    %588 = vmatpush1.msra.mxu0 0.0
    %589 = vmatprep.subr.mxu0 0.0
    %590 = vmatpush1.msra.mxu0 0.0
    %591 = vmatprep.subr.mxu0 0.0
    %592 = vmatpush1.msra.mxu0 0.0
    %593 = vmatprep.subr.mxu0 0.0
    %594 = vmatpush1.msra.mxu0 0.0
    %595 = vmatprep.subr.mxu0 0.0
    %596 = vmatpush1.msra.mxu0 0.0
    %597 = vmatprep.subr.mxu0 0.0
    %598 = vmatpush1.msra.mxu0 0.0
    %599 = vmatprep.subr.mxu0 0.0
    %600 = vmatpush1.msra.mxu0 0.0
    %601 = vmatprep.subr.mxu0 0.0
    %602 = vmatpush1.msra.mxu0 0.0
    %603 = vmatprep.subr.mxu0 0.0
    %604 = vmatpush1.msra.mxu0 0.0
    %605 = vmatprep.subr.mxu0 0.0
    %606 = vmatpush1.msra.mxu0 0.0
    %607 = vmatprep.subr.mxu0 0.0
    %608 = vmatpush1.msra.mxu0 0.0
    %609 = vmatprep.subr.mxu0 0.0
    %610 = vmatpush1.msra.mxu0 0.0
    %611 = vmatprep.subr.mxu0 0.0
    %612 = vmatpush1.msra.mxu0 0.0
    %613 = vmatprep.subr.mxu0 0.0
    %614 = vmatpush1.msra.mxu0 0.0
    %615 = vmatprep.subr.mxu0 0.0
    %616 = vmatpush1.msra.mxu0 0.0
    %617 = vmatprep.subr.mxu0 0.0
    %618 = vmatpush1.msra.mxu0 0.0
    %619 = vmatprep.subr.mxu0 0.0
    %620 = vmatpush1.msra.mxu0 0.0
    %621 = vmatprep.subr.mxu0 0.0
    %622 = vmatpush1.msra.mxu0 0.0
    %623 = vmatprep.mubr.f32.mxu0 0.0
    %624 = vmatmul.mubr.f32.gmra.mrb[0].mxu0 %v344
    %v625 = vpop.f32.mrb[0].mxu0
    %v626 = vadd.f32 %v555, %v625
    %v627 = vpop.f32.mrb[0].mxu0
    %v628 = vadd.f32 %v557, %v627
    %629 = vdwg.mxu0
    %630 = vmatprep.subr.mxu0 0.0
    %631 = vmatpush1.msra.mxu0 %v50
    %632 = vmatprep.subr.mxu0 0.0
    %633 = vmatpush1.msra.mxu0 %v53
    %634 = vmatprep.subr.mxu0 0.0
    %635 = vmatpush1.msra.mxu0 %v56
    %636 = vmatprep.subr.mxu0 0.0
    %637 = vmatpush1.msra.mxu0 %v59
    %638 = vmatprep.subr.mxu0 0.0
    %639 = vmatpush1.msra.mxu0 %v62
    %640 = vmatprep.subr.mxu0 0.0
    %641 = vmatpush1.msra.mxu0 %v65
    %642 = vmatprep.subr.mxu0 0.0
    %643 = vmatpush1.msra.mxu0 %v68
    %644 = vmatprep.subr.mxu0 0.0
    %645 = vmatpush1.msra.mxu0 %v71
    %646 = vmatprep.subr.mxu0 0.0
    %647 = vmatpush1.msra.mxu0 %v74
    %648 = vmatprep.subr.mxu0 0.0
    %649 = vmatpush1.msra.mxu0 %v77
    %650 = vmatprep.subr.mxu0 0.0
    %651 = vmatpush1.msra.mxu0 %v80
    %652 = vmatprep.subr.mxu0 0.0
    %653 = vmatpush1.msra.mxu0 %v83
    %654 = vmatprep.subr.mxu0 0.0
    %655 = vmatpush1.msra.mxu0 %v86
    %656 = vmatprep.subr.mxu0 0.0
    %657 = vmatpush1.msra.mxu0 %v89
    %658 = vmatprep.subr.mxu0 0.0
    %659 = vmatpush1.msra.mxu0 %v92
    %660 = vmatprep.subr.mxu0 0.0
    %661 = vmatpush1.msra.mxu0 %v95
    %662 = vmatprep.subr.mxu0 0.0
    %663 = vmatpush1.msra.mxu0 %v98
    %664 = vmatprep.subr.mxu0 0.0
    %665 = vmatpush1.msra.mxu0 %v101
    %666 = vmatprep.subr.mxu0 0.0
    %667 = vmatpush1.msra.mxu0 %v104
    %668 = vmatprep.subr.mxu0 0.0
    %669 = vmatpush1.msra.mxu0 %v107
    %670 = vmatprep.subr.mxu0 0.0
    %671 = vmatpush1.msra.mxu0 %v110
    %672 = vmatprep.subr.mxu0 0.0
    %673 = vmatpush1.msra.mxu0 %v113
    %674 = vmatprep.subr.mxu0 0.0
    %675 = vmatpush1.msra.mxu0 %v116
    %676 = vmatprep.subr.mxu0 0.0
    %677 = vmatpush1.msra.mxu0 %v119
    %678 = vmatprep.subr.mxu0 0.0
    %679 = vmatpush1.msra.mxu0 %v122
    %680 = vmatprep.subr.mxu0 0.0
    %681 = vmatpush1.msra.mxu0 %v125
    %682 = vmatprep.subr.mxu0 0.0
    %683 = vmatpush1.msra.mxu0 %v128
    %684 = vmatprep.subr.mxu0 0.0
    %685 = vmatpush1.msra.mxu0 %v131
    %686 = vmatprep.subr.mxu0 0.0
    %687 = vmatpush1.msra.mxu0 %v134
    %688 = vmatprep.subr.mxu0 0.0
    %689 = vmatpush1.msra.mxu0 %v137
    %690 = vmatprep.subr.mxu0 0.0
    %691 = vmatpush1.msra.mxu0 %v140
    %692 = vmatprep.subr.mxu0 0.0
    %693 = vmatpush1.msra.mxu0 %v143
    %694 = vmatprep.mubr.f32.mxu0 %v42
    %695 = vmatmul.mubr.f32.gmra.mrb[0].mxu0 %v41
    %v696 = vpop.f32.mrb[0].mxu0
    %v697 = vadd.f32 0.0, %v696
    %v698 = vpop.f32.mrb[0].mxu0
    %699 = vdwg.mxu0
    %700 = vmatprep.subr.mxu0 0.0
    %701 = vmatpush1.msra.mxu0 %v146
    %702 = vmatprep.subr.mxu0 0.0
    %703 = vmatpush1.msra.mxu0 %v149
    %704 = vmatprep.subr.mxu0 0.0
    %705 = vmatpush1.msra.mxu0 %v152
    %706 = vmatprep.subr.mxu0 0.0
    %707 = vmatpush1.msra.mxu0 %v155
    %708 = vmatprep.subr.mxu0 0.0
    %709 = vmatpush1.msra.mxu0 %v158
    %710 = vmatprep.subr.mxu0 0.0
    %711 = vmatpush1.msra.mxu0 %v161
    %712 = vmatprep.subr.mxu0 0.0
    %713 = vmatpush1.msra.mxu0 %v164
    %714 = vmatprep.subr.mxu0 0.0
    %715 = vmatpush1.msra.mxu0 %v167
    %716 = vmatprep.subr.mxu0 0.0
    %717 = vmatpush1.msra.mxu0 %v170
    %718 = vmatprep.subr.mxu0 0.0
    %719 = vmatpush1.msra.mxu0 %v173
    %720 = vmatprep.subr.mxu0 0.0
    %721 = vmatpush1.msra.mxu0 %v176
    %722 = vmatprep.subr.mxu0 0.0
    %723 = vmatpush1.msra.mxu0 %v179
    %724 = vmatprep.subr.mxu0 0.0
    %725 = vmatpush1.msra.mxu0 %v182
    %726 = vmatprep.subr.mxu0 0.0
    %727 = vmatpush1.msra.mxu0 %v185
    %728 = vmatprep.subr.mxu0 0.0
    %729 = vmatpush1.msra.mxu0 %v188
    %730 = vmatprep.subr.mxu0 0.0
    %731 = vmatpush1.msra.mxu0 %v191
    %732 = vmatprep.subr.mxu0 0.0
    %733 = vmatpush1.msra.mxu0 %v194
    %734 = vmatprep.subr.mxu0 0.0
    %735 = vmatpush1.msra.mxu0 %v197
    %736 = vmatprep.subr.mxu0 0.0
    %737 = vmatpush1.msra.mxu0 %v200
    %738 = vmatprep.subr.mxu0 0.0
    %739 = vmatpush1.msra.mxu0 %v203
    %740 = vmatprep.subr.mxu0 0.0
    %741 = vmatpush1.msra.mxu0 %v206
    %742 = vmatprep.subr.mxu0 0.0
    %743 = vmatpush1.msra.mxu0 %v209
    %744 = vmatprep.subr.mxu0 0.0
    %745 = vmatpush1.msra.mxu0 %v212
    %746 = vmatprep.subr.mxu0 0.0
    %747 = vmatpush1.msra.mxu0 %v215
    %748 = vmatprep.subr.mxu0 0.0
    %749 = vmatpush1.msra.mxu0 %v218
    %750 = vmatprep.subr.mxu0 0.0
    %751 = vmatpush1.msra.mxu0 %v221
    %752 = vmatprep.subr.mxu0 0.0
    %753 = vmatpush1.msra.mxu0 %v224
    %754 = vmatprep.subr.mxu0 0.0
    %755 = vmatpush1.msra.mxu0 %v227
    %756 = vmatprep.subr.mxu0 0.0
    %757 = vmatpush1.msra.mxu0 %v230
    %758 = vmatprep.subr.mxu0 0.0
    %759 = vmatpush1.msra.mxu0 %v233
    %760 = vmatprep.subr.mxu0 0.0
    %761 = vmatpush1.msra.mxu0 %v236
    %762 = vmatprep.subr.mxu0 0.0
    %763 = vmatpush1.msra.mxu0 %v239
    %764 = vmatprep.mubr.f32.mxu0 %v44
    %765 = vmatmul.mubr.f32.gmra.mrb[0].mxu0 %v43
    %v766 = vpop.f32.mrb[0].mxu0
    %v767 = vadd.f32 %v697, %v766
    %v768 = vpop.f32.mrb[0].mxu0
    %769 = vdwg.mxu0
    %770 = vmatprep.subr.mxu0 0.0
    %771 = vmatpush1.msra.mxu0 %v242
    %772 = vmatprep.subr.mxu0 0.0
    %773 = vmatpush1.msra.mxu0 %v245
    %774 = vmatprep.subr.mxu0 0.0
    %775 = vmatpush1.msra.mxu0 %v248
    %776 = vmatprep.subr.mxu0 0.0
    %777 = vmatpush1.msra.mxu0 %v251
    %778 = vmatprep.subr.mxu0 0.0
    %779 = vmatpush1.msra.mxu0 %v254
    %780 = vmatprep.subr.mxu0 0.0
    %781 = vmatpush1.msra.mxu0 %v257
    %782 = vmatprep.subr.mxu0 0.0
    %783 = vmatpush1.msra.mxu0 %v260
    %784 = vmatprep.subr.mxu0 0.0
    %785 = vmatpush1.msra.mxu0 %v263
    %786 = vmatprep.subr.mxu0 0.0
    %787 = vmatpush1.msra.mxu0 %v266
    %788 = vmatprep.subr.mxu0 0.0
    %789 = vmatpush1.msra.mxu0 %v269
    %790 = vmatprep.subr.mxu0 0.0
    %791 = vmatpush1.msra.mxu0 %v272
    %792 = vmatprep.subr.mxu0 0.0
    %793 = vmatpush1.msra.mxu0 %v275
    %794 = vmatprep.subr.mxu0 0.0
    %795 = vmatpush1.msra.mxu0 %v278
    %796 = vmatprep.subr.mxu0 0.0
    %797 = vmatpush1.msra.mxu0 %v281
    %798 = vmatprep.subr.mxu0 0.0
    %799 = vmatpush1.msra.mxu0 %v284
    %800 = vmatprep.subr.mxu0 0.0
    %801 = vmatpush1.msra.mxu0 %v287
    %802 = vmatprep.subr.mxu0 0.0
    %803 = vmatpush1.msra.mxu0 %v290
    %804 = vmatprep.subr.mxu0 0.0
    %805 = vmatpush1.msra.mxu0 %v293
    %806 = vmatprep.subr.mxu0 0.0
    %807 = vmatpush1.msra.mxu0 %v296
    %808 = vmatprep.subr.mxu0 0.0
    %809 = vmatpush1.msra.mxu0 %v299
    %810 = vmatprep.subr.mxu0 0.0
    %811 = vmatpush1.msra.mxu0 %v302
    %812 = vmatprep.subr.mxu0 0.0
    %813 = vmatpush1.msra.mxu0 %v305
    %814 = vmatprep.subr.mxu0 0.0
    %815 = vmatpush1.msra.mxu0 %v308
    %816 = vmatprep.subr.mxu0 0.0
    %817 = vmatpush1.msra.mxu0 %v311
    %818 = vmatprep.subr.mxu0 0.0
    %819 = vmatpush1.msra.mxu0 %v314
    %820 = vmatprep.subr.mxu0 0.0
    %821 = vmatpush1.msra.mxu0 %v317
    %822 = vmatprep.subr.mxu0 0.0
    %823 = vmatpush1.msra.mxu0 %v320
    %824 = vmatprep.subr.mxu0 0.0
    %825 = vmatpush1.msra.mxu0 %v323
    %826 = vmatprep.subr.mxu0 0.0
    %827 = vmatpush1.msra.mxu0 %v326
    %828 = vmatprep.subr.mxu0 0.0
    %829 = vmatpush1.msra.mxu0 %v329
    %830 = vmatprep.subr.mxu0 0.0
    %831 = vmatpush1.msra.mxu0 %v332
    %832 = vmatprep.subr.mxu0 0.0
    %833 = vmatpush1.msra.mxu0 %v335
    %834 = vmatprep.mubr.f32.mxu0 %v46
    %835 = vmatmul.mubr.f32.gmra.mrb[0].mxu0 %v45
    %v836 = vpop.f32.mrb[0].mxu0
    %v837 = vadd.f32 %v767, %v836
    %v838 = vpop.f32.mrb[0].mxu0
    %839 = vdwg.mxu0
    %840 = vmatprep.subr.mxu0 0.0
    %841 = vmatpush1.msra.mxu0 %v338
    %842 = vmatprep.subr.mxu0 0.0
    %843 = vmatpush1.msra.mxu0 %v341
    %844 = vmatprep.subr.mxu0 0.0
    %845 = vmatpush1.msra.mxu0 0.0
    %846 = vmatprep.subr.mxu0 0.0
    %847 = vmatpush1.msra.mxu0 0.0
    %848 = vmatprep.subr.mxu0 0.0
    %849 = vmatpush1.msra.mxu0 0.0
    %850 = vmatprep.subr.mxu0 0.0
    %851 = vmatpush1.msra.mxu0 0.0
    %852 = vmatprep.subr.mxu0 0.0
    %853 = vmatpush1.msra.mxu0 0.0
    %854 = vmatprep.subr.mxu0 0.0
    %855 = vmatpush1.msra.mxu0 0.0
    %856 = vmatprep.subr.mxu0 0.0
    %857 = vmatpush1.msra.mxu0 0.0
    %858 = vmatprep.subr.mxu0 0.0
    %859 = vmatpush1.msra.mxu0 0.0
    %860 = vmatprep.subr.mxu0 0.0
    %861 = vmatpush1.msra.mxu0 0.0
    %862 = vmatprep.subr.mxu0 0.0
    %863 = vmatpush1.msra.mxu0 0.0
    %864 = vmatprep.subr.mxu0 0.0
    %865 = vmatpush1.msra.mxu0 0.0
    %866 = vmatprep.subr.mxu0 0.0
    %867 = vmatpush1.msra.mxu0 0.0
    %868 = vmatprep.subr.mxu0 0.0
    %869 = vmatpush1.msra.mxu0 0.0
    %870 = vmatprep.subr.mxu0 0.0
    %871 = vmatpush1.msra.mxu0 0.0
    %872 = vmatprep.subr.mxu0 0.0
    %873 = vmatpush1.msra.mxu0 0.0
    %874 = vmatprep.subr.mxu0 0.0
    %875 = vmatpush1.msra.mxu0 0.0
    %876 = vmatprep.subr.mxu0 0.0
    %877 = vmatpush1.msra.mxu0 0.0
    %878 = vmatprep.subr.mxu0 0.0
    %879 = vmatpush1.msra.mxu0 0.0
    %880 = vmatprep.subr.mxu0 0.0
    %881 = vmatpush1.msra.mxu0 0.0
    %882 = vmatprep.subr.mxu0 0.0
    %883 = vmatpush1.msra.mxu0 0.0
    %884 = vmatprep.subr.mxu0 0.0
    %885 = vmatpush1.msra.mxu0 0.0
    %886 = vmatprep.subr.mxu0 0.0
    %887 = vmatpush1.msra.mxu0 0.0
    %888 = vmatprep.subr.mxu0 0.0
    %889 = vmatpush1.msra.mxu0 0.0
    %890 = vmatprep.subr.mxu0 0.0
    %891 = vmatpush1.msra.mxu0 0.0
    %892 = vmatprep.subr.mxu0 0.0
    %893 = vmatpush1.msra.mxu0 0.0
    %894 = vmatprep.subr.mxu0 0.0
    %895 = vmatpush1.msra.mxu0 0.0
    %896 = vmatprep.subr.mxu0 0.0
    %897 = vmatpush1.msra.mxu0 0.0
    %898 = vmatprep.subr.mxu0 0.0
    %899 = vmatpush1.msra.mxu0 0.0
    %900 = vmatprep.subr.mxu0 0.0
    %901 = vmatpush1.msra.mxu0 0.0
    %902 = vmatprep.subr.mxu0 0.0
    %903 = vmatpush1.msra.mxu0 0.0
    %904 = vmatprep.mubr.f32.mxu0 0.0
    %905 = vmatmul.mubr.f32.gmra.mrb[0].mxu0 %v344
    %v906 = vpop.f32.mrb[0].mxu0
    %v907 = vadd.f32 %v837, %v906
    %v908 = vpop.f32.mrb[0].mxu0
    %909 = vdwg.mxu0
    %v910 = vtanh.pop %v626
    %v911 = vtanh.pop %v628
    %v912 = vtanh.pop %v907
    %v913 = vld [vmem:[%s2] sm:$0xff]
    %v914 = vld [vmem:[%s2 + $0x8] sm:$0xff]
    %v915 = vld [vmem:[%s2 + $0x10] sm:$0xff]
    %v916 = vld [vmem:[%s2 + $0x18] sm:$0xff]
    %v917 = vld [vmem:[%s2 + $0x20] sm:$0xff]
    %v918 = vld [vmem:[%s2 + $0x28] sm:$0xff]
    %v919 = vld [vmem:[%s2 + $0x30] sm:$0xff]
    %v920 = vld [vmem:[%s2 + $0x38] sm:$0xff]
    %v921 = vld [vmem:[%s2 + $0x40] sm:$0xff]
    %v922 = vld [vmem:[%s2 + $0x48] sm:$0xff]
    %v923 = vld [vmem:[%s2 + $0x50] sm:$0xff]
    %v924 = vld [vmem:[%s2 + $0x58] sm:$0xff]
    %v925 = vld [vmem:[%s2 + $0x60] sm:$0xff]
    %v926 = vld [vmem:[%s2 + $0x68] sm:$0xff]
    %v927 = vld [vmem:[%s2 + $0x70] sm:$0xff]
    %v928 = vld [vmem:[%s2 + $0x78] sm:$0xff]
    %v929 = vld [vmem:[%s2 + $0x80] sm:$0xff]
    %v930 = vld [vmem:[%s2 + $0x88] sm:$0xff]
    %v931 = vld [vmem:[%s2 + $0x90] sm:$0xff]
    %v932 = vld [vmem:[%s2 + $0x98] sm:$0xff]
    %v933 = vld [vmem:[%s2 + $0xa0] sm:$0xff]
    %v934 = vld [vmem:[%s2 + $0xa8] sm:$0xff]
    %v935 = vld [vmem:[%s2 + $0xb0] sm:$0xff]
    %v936 = vld [vmem:[%s2 + $0xb8] sm:$0xff]
    %v937 = vld [vmem:[%s2 + $0xc0] sm:$0xff]
    %v938 = vld [vmem:[%s2 + $0xc8] sm:$0xff]
    %v939 = vld [vmem:[%s2 + $0xd0] sm:$0xff]
    %v940 = vld [vmem:[%s2 + $0xd8] sm:$0xff]
    %v941 = vld [vmem:[%s2 + $0xe0] sm:$0xff]
    %v942 = vld [vmem:[%s2 + $0xe8] sm:$0xff]
    %v943 = vld [vmem:[%s2 + $0xf0] sm:$0xff]
    %v944 = vld [vmem:[%s2 + $0xf8] sm:$0xff]
    %v945 = vld [vmem:[%s2 + $0x100] sm:$0xff]
    %v946 = vld [vmem:[%s2 + $0x108] sm:$0xff]
    %v947 = vld [vmem:[%s2 + $0x110] sm:$0xff]
    %v948 = vld [vmem:[%s2 + $0x118] sm:$0xff]
    %v949 = vld [vmem:[%s2 + $0x120] sm:$0xff]
    %v950 = vld [vmem:[%s2 + $0x128] sm:$0xff]
    %v951 = vld [vmem:[%s2 + $0x130] sm:$0xff]
    %v952 = vld [vmem:[%s2 + $0x138] sm:$0xff]
    %v953 = vld [vmem:[%s2 + $0x140] sm:$0xff]
    %v954 = vld [vmem:[%s2 + $0x148] sm:$0xff]
    %v955 = vld [vmem:[%s2 + $0x150] sm:$0xff]
    %v956 = vld [vmem:[%s2 + $0x158] sm:$0xff]
    %v957 = vld [vmem:[%s2 + $0x160] sm:$0xff]
    %v958 = vld [vmem:[%s2 + $0x168] sm:$0xff]
    %v959 = vld [vmem:[%s2 + $0x170] sm:$0x1]
    %vm960 = vcmask 924672
    %v962 = vsel %vm960, %v912, 0
    %vm964 = vcmask 1040384
    %v966 = vsel %vm964, %v959, 0
    %968 = vmatprep.subr.mxu0 0.0
    %969 = vmatpush1.msra.mxu0 %v913
    %970 = vmatprep.subr.mxu0 0.0
    %971 = vmatpush1.msra.mxu0 %v914
    %972 = vmatprep.subr.mxu0 0.0
    %973 = vmatpush1.msra.mxu0 %v915
    %974 = vmatprep.subr.mxu0 0.0
    %975 = vmatpush1.msra.mxu0 %v916
    %976 = vmatprep.subr.mxu0 0.0
    %977 = vmatpush1.msra.mxu0 %v917
    %978 = vmatprep.subr.mxu0 0.0
    %979 = vmatpush1.msra.mxu0 %v918
    %980 = vmatprep.subr.mxu0 0.0
    %981 = vmatpush1.msra.mxu0 %v919
    %982 = vmatprep.subr.mxu0 0.0
    %983 = vmatpush1.msra.mxu0 %v920
    %984 = vmatprep.subr.mxu0 0.0
    %985 = vmatpush1.msra.mxu0 %v921
    %986 = vmatprep.subr.mxu0 0.0
    %987 = vmatpush1.msra.mxu0 %v922
    %988 = vmatprep.subr.mxu0 0.0
    %989 = vmatpush1.msra.mxu0 %v923
    %990 = vmatprep.subr.mxu0 0.0
    %991 = vmatpush1.msra.mxu0 %v924
    %992 = vmatprep.subr.mxu0 0.0
    %993 = vmatpush1.msra.mxu0 %v925
    %994 = vmatprep.subr.mxu0 0.0
    %995 = vmatpush1.msra.mxu0 %v926
    %996 = vmatprep.subr.mxu0 0.0
    %997 = vmatpush1.msra.mxu0 %v927
    %998 = vmatprep.subr.mxu0 0.0
    %999 = vmatpush1.msra.mxu0 %v928
    %1000 = vmatprep.subr.mxu0 0.0
    %1001 = vmatpush1.msra.mxu0 %v929
    %1002 = vmatprep.subr.mxu0 0.0
    %1003 = vmatpush1.msra.mxu0 %v930
    %1004 = vmatprep.subr.mxu0 0.0
    %1005 = vmatpush1.msra.mxu0 %v931
    %1006 = vmatprep.subr.mxu0 0.0
    %1007 = vmatpush1.msra.mxu0 %v932
    %1008 = vmatprep.subr.mxu0 0.0
    %1009 = vmatpush1.msra.mxu0 %v933
    %1010 = vmatprep.subr.mxu0 0.0
    %1011 = vmatpush1.msra.mxu0 %v934
    %1012 = vmatprep.subr.mxu0 0.0
    %1013 = vmatpush1.msra.mxu0 %v935
    %1014 = vmatprep.subr.mxu0 0.0
    %1015 = vmatpush1.msra.mxu0 %v936
    %1016 = vmatprep.subr.mxu0 0.0
    %1017 = vmatpush1.msra.mxu0 %v937
    %1018 = vmatprep.subr.mxu0 0.0
    %1019 = vmatpush1.msra.mxu0 %v938
    %1020 = vmatprep.subr.mxu0 0.0
    %1021 = vmatpush1.msra.mxu0 %v939
    %1022 = vmatprep.subr.mxu0 0.0
    %1023 = vmatpush1.msra.mxu0 %v940
    %1024 = vmatprep.subr.mxu0 0.0
    %1025 = vmatpush1.msra.mxu0 %v941
    %1026 = vmatprep.subr.mxu0 0.0
    %1027 = vmatpush1.msra.mxu0 %v942
    %1028 = vmatprep.subr.mxu0 0.0
    %1029 = vmatpush1.msra.mxu0 %v943
    %1030 = vmatprep.subr.mxu0 0.0
    %1031 = vmatpush1.msra.mxu0 %v944
    %1032 = vmatprep.mubr.f32.mxu0 %v911
    %1033 = vmatmul.mubr.f32.gmra.mrb[0].mxu0 %v910
    %v1034 = vpop.f32.mrb[0].mxu0
    %v1035 = vadd.f32 0.0, %v1034
    %v1036 = vpop.f32.mrb[0].mxu0
    %1037 = vdwg.mxu0
    %1038 = vmatprep.subr.mxu0 0.0
    %1039 = vmatpush1.msra.mxu0 %v945
    %1040 = vmatprep.subr.mxu0 0.0
    %1041 = vmatpush1.msra.mxu0 %v946
    %1042 = vmatprep.subr.mxu0 0.0
    %1043 = vmatpush1.msra.mxu0 %v947
    %1044 = vmatprep.subr.mxu0 0.0
    %1045 = vmatpush1.msra.mxu0 %v948
    %1046 = vmatprep.subr.mxu0 0.0
    %1047 = vmatpush1.msra.mxu0 %v949
    %1048 = vmatprep.subr.mxu0 0.0
    %1049 = vmatpush1.msra.mxu0 %v950
    %1050 = vmatprep.subr.mxu0 0.0
    %1051 = vmatpush1.msra.mxu0 %v951
    %1052 = vmatprep.subr.mxu0 0.0
    %1053 = vmatpush1.msra.mxu0 %v952
    %1054 = vmatprep.subr.mxu0 0.0
    %1055 = vmatpush1.msra.mxu0 %v953
    %1056 = vmatprep.subr.mxu0 0.0
    %1057 = vmatpush1.msra.mxu0 %v954
    %1058 = vmatprep.subr.mxu0 0.0
    %1059 = vmatpush1.msra.mxu0 %v955
    %1060 = vmatprep.subr.mxu0 0.0
    %1061 = vmatpush1.msra.mxu0 %v956
    %1062 = vmatprep.subr.mxu0 0.0
    %1063 = vmatpush1.msra.mxu0 %v957
    %1064 = vmatprep.subr.mxu0 0.0
    %1065 = vmatpush1.msra.mxu0 %v958
    %1066 = vmatprep.subr.mxu0 0.0
    %1067 = vmatpush1.msra.mxu0 %v966
    %1068 = vmatprep.subr.mxu0 0.0
    %1069 = vmatpush1.msra.mxu0 0.0
    %1070 = vmatprep.subr.mxu0 0.0
    %1071 = vmatpush1.msra.mxu0 0.0
    %1072 = vmatprep.subr.mxu0 0.0
    %1073 = vmatpush1.msra.mxu0 0.0
    %1074 = vmatprep.subr.mxu0 0.0
    %1075 = vmatpush1.msra.mxu0 0.0
    %1076 = vmatprep.subr.mxu0 0.0
    %1077 = vmatpush1.msra.mxu0 0.0
    %1078 = vmatprep.subr.mxu0 0.0
    %1079 = vmatpush1.msra.mxu0 0.0
    %1080 = vmatprep.subr.mxu0 0.0
    %1081 = vmatpush1.msra.mxu0 0.0
    %1082 = vmatprep.subr.mxu0 0.0
    %1083 = vmatpush1.msra.mxu0 0.0
    %1084 = vmatprep.subr.mxu0 0.0
    %1085 = vmatpush1.msra.mxu0 0.0
    %1086 = vmatprep.subr.mxu0 0.0
    %1087 = vmatpush1.msra.mxu0 0.0
    %1088 = vmatprep.subr.mxu0 0.0
    %1089 = vmatpush1.msra.mxu0 0.0
    %1090 = vmatprep.subr.mxu0 0.0
    %1091 = vmatpush1.msra.mxu0 0.0
    %1092 = vmatprep.subr.mxu0 0.0
    %1093 = vmatpush1.msra.mxu0 0.0
    %1094 = vmatprep.subr.mxu0 0.0
    %1095 = vmatpush1.msra.mxu0 0.0
    %1096 = vmatprep.subr.mxu0 0.0
    %1097 = vmatpush1.msra.mxu0 0.0
    %1098 = vmatprep.subr.mxu0 0.0
    %1099 = vmatpush1.msra.mxu0 0.0
    %1100 = vmatprep.subr.mxu0 0.0
    %1101 = vmatpush1.msra.mxu0 0.0
    %1102 = vmatprep.mubr.f32.mxu0 0.0
    %1103 = vmatmul.mubr.f32.gmra.mrb[0].mxu0 %v962
    %v1104 = vpop.f32.mrb[0].mxu0
    %v1105 = vadd.f32 %v1035, %v1104
    %v1106 = vpop.f32.mrb[0].mxu0
    %1107 = vdwg.mxu0
    %vm1108 = vcmask 80896
    %v1109 = vsel %vm1108, %v1105, -inf
    %1110 = vmax.xlane.f32.xlu0 %v1109
    %v1111 = vpop.xlane.xlu0 %1110
    %v1112 = vsub.f32 %v1105, %v1111
    %v1113 = vmul.f32 %v1112, 1.442695
    %v1114 = vpow.pop %v1113
    %v1115 = vsel %vm1108, %v1114, 0.0
    %1116 = vadd.xlane.f32.xlu0 %v1115
    %v1117 = vpop.xlane.xlu0 %1116
    %v1118 = vlog2.pop %v1117
    %v1119 = vmul.f32 %v1118, 0.6931472
    %v1120 = vadd.f32 %v1111, %v1119
    %v1121 = vsub.f32 %v1105, %v1120
    %1122 = vst.msk [vmem:[#allocation7] sm:$0xff] %vm1108, %v1121
    // Predicated region
    $region22: #{tpu_custom_call.1} parent=1 // pred_check
      _
    $region23: #{tpu_custom_call.1} parent=1 // pred_check_branch
      %1124 = sbr.rel (0) target = $region25
    $region24: #{tpu_custom_call.1} parent=1 // pred_region
      %s1126 = ssub.s32 128, 128
      %1127 = vsyncadd [#allocation4], %s1126
      %s1129 = sshll.u32 [#allocation7], 4
      %s1130 = int_to_ptr.vmem [resolvable:$true] %s1129
      %1132 = dma.vmem_to_hbm [thread:$0]  %s1130, 128, %s3, [#allocation4]
    $region25: #{tpu_custom_call.1} parent=1 // pred_fallthru
      _
    // Predicated region
    $region26: #{tpu_custom_call.1} parent=1 // pred_check
      _
    $region27: #{tpu_custom_call.1} parent=1 // pred_check_branch
      %1134 = sbr.rel (0) target = $region29
    $region28: #{tpu_custom_call.1} parent=1 // pred_region
      %1135 = dma.done [#allocation4], 128
    $region29: #{tpu_custom_call.1} parent=1 // pred_fallthru
      _
    %1136 = vsyncpa [#allocation3], 1
    %1137 = vsyncpa [#allocation6], 1
    %1138 = vsyncpa [#allocation4], 1

</llo_original>
